<compile_context>
chip_gen: v6e
topology: v6e:2x2x1
jax: 0.10.0
libtpu: 0.0.40
codegen_flags: <defaults>
</compile_context>

<pallas_src>
import jax
import jax.numpy as jnp
from jax.experimental import pallas as pl
from jax.experimental.pallas import tpu as pltpu


def _make_kernel(lane_dense):
    def kernel(q_ref, k_ref, o_ref):
        # q_ref: (TB, TQ, D), k_ref: (TB, Lk, D)
        # o_ref: (TB, TQ*Lk) if lane_dense else (TB, TQ, Lk)
        d = q_ref.shape[-1]
        scale = d ** -0.5

        # Scale the smaller (TQ, D) operand in its native dtype (weak-typed
        # python float keeps q's dtype, so bf16 inputs stay bf16 into the MXU).
        q = q_ref[...] * scale
        k = k_ref[...]

        # Contract on the last dim of both operands: feeds the MXU directly,
        # no explicit k.T in the kernel (relayout, if any, is handled once by
        # Mosaic per resident k tile, not per output row).
        s = jnp.einsum("bqd,bkd->bqk", q, k,
                       preferred_element_type=jnp.float32)  # (TB, TQ, Lk) f32

        # Row-wise softmax over the last axis (dim=2 of the (B, Lq, Lk) output).
        m = jnp.max(s, axis=-1, keepdims=True)
        p = jnp.exp(s - m)
        denom = jnp.sum(p, axis=-1, keepdims=True)
        attn = (p / denom).astype(o_ref.dtype)   # exact divide: rows sum to 1

        if lane_dense:
            tb, tq, lk = attn.shape
            o_ref[...] = attn.reshape(tb, tq * lk)
        else:
            o_ref[...] = attn

    return kernel


def _vmem_capacity_bytes():
    try:
        return int(pltpu.get_tpu_info().vmem_capacity_bytes)
    except Exception:
        # Fallback (interpret mode / unknown device): assume the smallest part.
        return 64 << 20


def _choose_tiles(B, Lq, Lk, D, q_dtype, k_dtype, out_dtype, budget):
    """Pick (TB, TQ, lane_dense) so the double-buffered working set fits the budget."""
    qib = jnp.dtype(q_dtype).itemsize
    kib = jnp.dtype(k_dtype).itemsize
    oib = jnp.dtype(out_dtype).itemsize

    def block_bytes(tb, tq):
        # double-buffered q/k/out pipeline blocks + in-kernel f32 score/prob/attn tiles
        return (2 * tb * (tq * D * qib + Lk * D * kib + tq * Lk * oib)
                + 3 * tb * tq * Lk * 4)

    # dtype-aware minimum row tile (sublane packing: f32 -> 8, bf16 -> 16, i8/fp8 -> 32)
    min_tq = {4: 8, 2: 16, 1: 32}.get(qib, 8)

    # 1) Tile Lq (k stays resident per batch-pack; Lk and D are never tiled).
    if block_bytes(1, Lq) <= budget:
        tq = Lq
    else:
        tq = None
        for cand in (4096, 2048, 1024, 512, 256, 128, 64, 32, 16, 8):
            if cand < min_tq or cand >= Lq:
                continue
            if block_bytes(1, cand) <= budget:
                tq = cand
                break
        if tq is None:
            # Nothing fits the conservative budget (huge Lk*D). Fall back to the
            # smallest legal row tile and let vmem_limit absorb what it can.
            # TODO(synk): add an Lk grid axis with an online-softmax accumulator
            # for working sets that exceed VMEM even at the minimum row tile.
            tq = min(Lq, min_tq)

    # 2) Tiny-shape regime: pack batches per grid step to amortize the ~0.35 us
    #    per-step overhead and widen the stored slab (more sublanes per vst).
    tb = 1
    if block_bytes(1, tq) <= (4 << 20):
        for cand in (B, 64, 32, 16, 8, 4, 2):
            if cand <= 1 or cand > B:
                continue
            if block_bytes(cand, tq) <= budget:
                tb = cand
                break

    # 3) Lane-dense output path: with Lk < 128 every (.., tq, Lk) store is a
    #    masked partial vst; flattening (Lq, Lk) -> Lq*Lk in the out_spec gives
    #    unmasked lane-dense stores (biggest measured lever for a write-bound
    #    kernel). Only legal when the flattened block obeys the (8, 128) rule.
    lane_dense = (Lk < 128
                  and (tb % 8 == 0 or tb == B)
                  and ((tq * Lk) % 128 == 0 or tq == Lq))

    return tb, tq, lane_dense, block_bytes(tb, tq)


def attention_map(q, k, out_dtype=jnp.float32):
    """q: (B, Lq, D), k: (B, Lk, D) -> attention (B, Lq, Lk), softmax over last axis.

    out_dtype defaults to f32 to match the PyTorch reference; pass jnp.bfloat16
    to halve the (dominant) output write traffic if downstream tolerates it.
    """
    B, Lq, D = q.shape
    Bk, Lk, Dk = k.shape
    assert B == Bk and D == Dk

    # Generation-aware VMEM policy.
    cap = _vmem_capacity_bytes()
    if cap >= (128 << 20):          # v5e / v6e: 128 MiB physical VMEM
        budget, vmem_hi = 56 << 20, 100 << 20
    else:                           # v7x: 64 MiB per TensorCore
        budget, vmem_hi = 20 << 20, 48 << 20

    tb, tq, lane_dense, blk_bytes = _choose_tiles(
        B, Lq, Lk, D, q.dtype, k.dtype, out_dtype, budget)

    grid = (pl.cdiv(B, tb), pl.cdiv(Lq, tq))

    # blk_bytes already includes the 2x double-buffer factor; just add headroom.
    vmem_limit = int(min(vmem_hi, max(32 << 20, blk_bytes + (8 << 20))))

    # Batch-major megacore sharding when possible: splitting the inner Lq axis
    # across v7x's two cores would re-fetch the resident k tile per core.
    if grid[0] >= 2:
        dims = ("parallel", "arbitrary")
    else:
        dims = ("parallel", "parallel")

    in_specs = [
        pl.BlockSpec((tb, tq, D), lambda b, i: (b, i, 0)),
        # k resident across the inner Lq axis (re-fetched once per batch-pack).
        # TODO(synk): on v7x, drop k's pipeline depth to 1 to reclaim its idle
        # second buffer for a larger TQ tile.
        pl.BlockSpec((tb, Lk, D), lambda b, i: (b, 0, 0)),
    ]

    if lane_dense:
        out_shape = jax.ShapeDtypeStruct((B, Lq * Lk), out_dtype)
        out_specs = pl.BlockSpec((tb, tq * Lk), lambda b, i: (b, i))
    else:
        out_shape = jax.ShapeDtypeStruct((B, Lq, Lk), out_dtype)
        out_specs = pl.BlockSpec((tb, tq, Lk), lambda b, i: (b, i, 0))

    out = pl.pallas_call(
        _make_kernel(lane_dense),
        out_shape=out_shape,
        grid_spec=pltpu.PrefetchScalarGridSpec(
            num_scalar_prefetch=0,
            grid=grid,
            in_specs=in_specs,
            out_specs=out_specs,
        ),
        compiler_params=pltpu.CompilerParams(
            dimension_semantics=dims,
            vmem_limit_bytes=vmem_limit,
        ),
    )(q, k)

    if lane_dense:
        out = out.reshape(B, Lq, Lk)
    return out


def _reference(q, k):
    scale = k.shape[-1] ** -0.5
    s = jnp.einsum("bqd,bkd->bqk", q, k) * scale
    return jax.nn.softmax(s, axis=2)


if __name__ == "__main__":
    key = jax.random.PRNGKey(0)
    kq, kk = jax.random.split(key)

    B, Lq, Lk, D = 2, 8, 8, 32
    q = jax.random.normal(kq, (B, Lq, D), dtype=jnp.float32)
    k = jax.random.normal(kk, (B, Lk, D), dtype=jnp.float32)

    out = jax.block_until_ready(attention_map(q, k))

    ref = _reference(q, k)
    assert out.shape == (B, Lq, Lk)
    assert jnp.allclose(out, ref, atol=1e-4, rtol=1e-4), "mismatch vs reference"
    assert jnp.allclose(jnp.sum(out, axis=2), 1.0, atol=1e-4), "rows must sum to 1"

    print("KERNEL_OK")
</pallas_src>

<mosaic_0001>
module attributes {stable_mosaic.version = 11 : i64} {
  func.func @kernel(%arg0: i32, %arg1: i32, %arg2: memref<2x8x32xf32, #tpu.memory_space<vmem>>, %arg3: memref<2x8x32xf32, #tpu.memory_space<vmem>>, %arg4: memref<2x64xf32, #tpu.memory_space<vmem>>) attributes {dimension_semantics = [#tpu.dimension_semantics<parallel>, #tpu.dimension_semantics<parallel>], iteration_bounds = array<i64: 1, 1>, scalar_prefetch = 0 : i64, scratch_operands = 0 : i64, tpu.core_type = #tpu.core_type<tc>, window_params = [{transform_indices = @transform_0, window_bounds = array<i64: 2, 8, 32>}, {transform_indices = @transform_1, window_bounds = array<i64: 2, 8, 32>}, {transform_indices = @transform_2, window_bounds = array<i64: 2, 64>}]} {
    %c0 = arith.constant 0 : index
    %c0_0 = arith.constant 0 : index
    %c0_1 = arith.constant 0 : index
    %0 = vector.load %arg2[%c0, %c0_0, %c0_1] : memref<2x8x32xf32, #tpu.memory_space<vmem>>, vector<2x8x32xf32>
    %cst = arith.constant 0.176776692 : f32
    %1 = vector.broadcast %cst : f32 to vector<2x8x32xf32>
    %2 = arith.mulf %0, %1 : vector<2x8x32xf32>
    %c0_2 = arith.constant 0 : index
    %c0_3 = arith.constant 0 : index
    %c0_4 = arith.constant 0 : index
    %3 = vector.load %arg3[%c0_2, %c0_3, %c0_4] : memref<2x8x32xf32, #tpu.memory_space<vmem>>, vector<2x8x32xf32>
    "tpu.trace_start"() <{level = 10 : i32, message = "bqd,bkd->bqk"}> : () -> ()
    %cst_5 = arith.constant dense<0.000000e+00> : vector<2x8x8xf32>
    %4 = tpu.matmul %2, %3, %cst_5 {dimension_numbers = #tpu.dot_dimension_numbers<[2], [2], [1], [1], [0, 0, 0, 1, 1, 1], [0], [0]>} : vector<2x8x32xf32>, vector<2x8x32xf32>, vector<2x8x8xf32> -> vector<2x8x8xf32>
    "tpu.trace_stop"() : () -> ()
    %cst_6 = arith.constant dense<0xFF800000> : vector<2x8xf32>
    %5 = vector.multi_reduction <maximumf>, %4, %cst_6 [2] : vector<2x8x8xf32> to vector<2x8xf32>
    %6 = vector.shape_cast %5 : vector<2x8xf32> to vector<2x8x1xf32>
    %7 = vector.broadcast %6 : vector<2x8x1xf32> to vector<2x8x8xf32>
    %8 = arith.subf %4, %7 : vector<2x8x8xf32>
    %9 = math.exp %8 : vector<2x8x8xf32>
    %cst_7 = arith.constant dense<0.000000e+00> : vector<2x8xf32>
    %10 = vector.multi_reduction <add>, %9, %cst_7 [2] : vector<2x8x8xf32> to vector<2x8xf32>
    %11 = vector.shape_cast %10 : vector<2x8xf32> to vector<2x8x1xf32>
    %12 = vector.broadcast %11 : vector<2x8x1xf32> to vector<2x8x8xf32>
    %13 = arith.divf %9, %12 : vector<2x8x8xf32>
    %14 = vector.shape_cast %13 : vector<2x8x8xf32> to vector<2x64xf32>
    %c0_8 = arith.constant 0 : index
    %c0_9 = arith.constant 0 : index
    %15 = vector.load %arg4[%c0_8, %c0_9] : memref<2x64xf32, #tpu.memory_space<vmem>>, vector<2x64xf32>
    tpu.vector_store %arg4[%c0_8, %c0_9], %14 {strides = array<i32>} : memref<2x64xf32, #tpu.memory_space<vmem>>, vector<2x64xf32>,
    return
  }
  func.func @transform_0(%arg0: i32, %arg1: i32) -> (i32, i32, i32) {
    %c0_i32 = arith.constant 0 : i32
    %c0_i32_0 = arith.constant 0 : i32
    return %arg0, %arg1, %c0_i32 : i32, i32, i32
  }
  func.func @transform_1(%arg0: i32, %arg1: i32) -> (i32, i32, i32) {
    %c0_i32 = arith.constant 0 : i32
    %c0_i32_0 = arith.constant 0 : i32
    %c0_i32_1 = arith.constant 0 : i32
    return %arg0, %c0_i32, %c0_i32_0 : i32, i32, i32
  }
  func.func @transform_2(%arg0: i32, %arg1: i32) -> (i32, i32) {
    %c0_i32 = arith.constant 0 : i32
    return %arg0, %arg1 : i32, i32
  }
}

</mosaic_0001>

<llo_original>
// kernel: tpu_custom_call.1
$region0: #{tpu_custom_call.1}
  #allocation0 [shape = 'u32[]', space=smem, size = 0x4, offset = 0x4, fixed_abs, tag = 'smem constant byte address 0x4 - core index']
  #allocation1 [shape = 'u32[144,128]{1,0:T(1,128)}', space=vmem, size = 0x12000, scoped, tag = 'internal scratch']
  %s0 = inlined_call_operand.hbm [shape: f32[2,8,32], index: 0, kind: input, shape index: {}]
  %s1 = inlined_call_operand.hbm [shape: f32[2,8,32], index: 1, kind: input, shape index: {}]
  %s2 = inlined_call_operand.hbm [shape: f32[2,64], index: 2, kind: output, shape index: {}]
  %s3 = sld [smem:[#allocation0]]
  $region26: #{tpu_custom_call.1} parent=0
    _
  %s5 = ssub.s32 1, %s3
  %s6 = scalar_select 0, %s5, %s3
  $region1: #{tpu_custom_call.1} parent=0
    #allocation2 [shape = 'u8[8192]{0}', space=vmem, size = 0x2000, scoped, tag = 'input window, operand 0, single buffered']
    #allocation3 [shape = 's32[1]{0}', space=sflag, size = 0x4, scoped, tag = 'scoped memory for tpu_custom_call.1']
    #allocation4 [shape = 's32[1]{0}', space=sflag, size = 0x4, scoped, tag = 'scoped memory for tpu_custom_call.1']
    #allocation5 [shape = 'u8[8192]{0}', space=vmem, size = 0x2000, scoped, tag = 'input window, operand 1, single buffered']
    #allocation6 [shape = 's32[1]{0}', space=sflag, size = 0x4, scoped, tag = 'scoped memory for tpu_custom_call.1']
    #allocation7 [shape = 'u8[1024]{0}', space=vmem, size = 0x400, scoped, tag = 'output window, operand 0, single buffered']
    %7 = vsyncpa [#allocation3], 0
    %8 = vsyncpa [#allocation6], 0
    %9 = vsyncpa [#allocation4], 0
    // Predicated region
    $region2: #{tpu_custom_call.1} parent=1 // pred_check
      _
    $region3: #{tpu_custom_call.1} parent=1 // pred_check_branch
      %11 = sbr.rel (0) target = $region5
    $region4: #{tpu_custom_call.1} parent=1 // pred_region
      %s13 = ssub.s32 256, 256
      %14 = vsyncadd [#allocation3], %s13
      %s15 = sshll.u32 [#allocation2], 4
      %s16 = int_to_ptr.vmem [resolvable:$true] %s15
      %21 = dma.hbm_to_vmem [thread:$0]  %s0, 256, %s16, [#allocation3], 128, 128, 8
    $region5: #{tpu_custom_call.1} parent=1 // pred_fallthru
      _
    // Predicated region
    $region6: #{tpu_custom_call.1} parent=1 // pred_check
      _
    $region7: #{tpu_custom_call.1} parent=1 // pred_check_branch
      %23 = sbr.rel (0) target = $region9
    $region8: #{tpu_custom_call.1} parent=1 // pred_region
      %s25 = ssub.s32 256, 256
      %26 = vsyncadd [#allocation6], %s25
      %s27 = sshll.u32 [#allocation5], 4
      %s28 = int_to_ptr.vmem [resolvable:$true] %s27
      %33 = dma.hbm_to_vmem [thread:$0]  %s1, 256, %s28, [#allocation6], 128, 128, 8
    $region9: #{tpu_custom_call.1} parent=1 // pred_fallthru
      _
    // Predicated region
    $region10: #{tpu_custom_call.1} parent=1 // pred_check
      _
    $region11: #{tpu_custom_call.1} parent=1 // pred_check_branch
      %35 = sbr.rel (0) target = $region13
    $region12: #{tpu_custom_call.1} parent=1 // pred_region
      %36 = dma.done [#allocation3], 256
    $region13: #{tpu_custom_call.1} parent=1 // pred_fallthru
      _
    // Predicated region
    $region14: #{tpu_custom_call.1} parent=1 // pred_check
      _
    $region15: #{tpu_custom_call.1} parent=1 // pred_check_branch
      %38 = sbr.rel (0) target = $region17
    $region16: #{tpu_custom_call.1} parent=1 // pred_region
      %39 = dma.done [#allocation6], 256
    $region17: #{tpu_custom_call.1} parent=1 // pred_fallthru
      _
    %v40 = vld [vmem:[#allocation2] sm:$0xff]
    %v41 = vld [vmem:[#allocation2 + $0x8] sm:$0xff]
    %v42 = vmul.f32 %v40, 0.17677669
    %v43 = vmul.f32 %v41, 0.17677669
    %v44 = vld [vmem:[#allocation5] sm:$0xff]
    %v45 = vld [vmem:[#allocation5 + $0x8] sm:$0xff]
    %vm46 = vcmask 261120
    %v48 = vsel %vm46, %v42, 0
    %v51 = vsel %vm46, %v44, 0
    %53 = vmatprep.subr.mxu0 0.0
    %54 = vmatpush1.xpose.msra.mxu0 0.0
    %55 = vmatprep.subr.mxu0 0.0
    %56 = vmatpush1.xpose.msra.mxu0 0.0
    %57 = vmatprep.subr.mxu0 0.0
    %58 = vmatpush1.xpose.msra.mxu0 0.0
    %59 = vmatprep.subr.mxu0 0.0
    %60 = vmatpush1.xpose.msra.mxu0 0.0
    %61 = vmatprep.subr.mxu0 0.0
    %62 = vmatpush1.xpose.msra.mxu0 0.0
    %63 = vmatprep.subr.mxu0 0.0
    %64 = vmatpush1.xpose.msra.mxu0 0.0
    %65 = vmatprep.subr.mxu0 0.0
    %66 = vmatpush1.xpose.msra.mxu0 0.0
    %67 = vmatprep.subr.mxu0 0.0
    %68 = vmatpush1.xpose.msra.mxu0 0.0
    %69 = vmatprep.subr.mxu0 0.0
    %70 = vmatpush1.xpose.msra.mxu0 0.0
    %71 = vmatprep.subr.mxu0 0.0
    %72 = vmatpush1.xpose.msra.mxu0 0.0
    %73 = vmatprep.subr.mxu0 0.0
    %74 = vmatpush1.xpose.msra.mxu0 0.0
    %75 = vmatprep.subr.mxu0 0.0
    %76 = vmatpush1.xpose.msra.mxu0 0.0
    %77 = vmatprep.subr.mxu0 0.0
    %78 = vmatpush1.xpose.msra.mxu0 0.0
    %79 = vmatprep.subr.mxu0 0.0
    %80 = vmatpush1.xpose.msra.mxu0 0.0
    %81 = vmatprep.subr.mxu0 0.0
    %82 = vmatpush1.xpose.msra.mxu0 0.0
    %83 = vmatprep.subr.mxu0 0.0
    %84 = vmatpush1.xpose.msra.mxu0 %v51
    %85 = vmatprep.subr.mxu0 0.0
    %86 = vmatpush2.xpose.msra.mxu0 0.0
    %87 = vmatprep.subr.mxu0 0.0
    %88 = vmatpush2.xpose.msra.mxu0 0.0
    %89 = vmatprep.subr.mxu0 0.0
    %90 = vmatpush2.xpose.msra.mxu0 0.0
    %91 = vmatprep.subr.mxu0 0.0
    %92 = vmatpush2.xpose.msra.mxu0 0.0
    %93 = vmatprep.subr.mxu0 0.0
    %94 = vmatpush2.xpose.msra.mxu0 0.0
    %95 = vmatprep.subr.mxu0 0.0
    %96 = vmatpush2.xpose.msra.mxu0 0.0
    %97 = vmatprep.subr.mxu0 0.0
    %98 = vmatpush2.xpose.msra.mxu0 0.0
    %99 = vmatprep.subr.mxu0 0.0
    %100 = vmatpush2.xpose.msra.mxu0 0.0
    %101 = vmatprep.subr.mxu0 0.0
    %102 = vmatpush2.xpose.msra.mxu0 0.0
    %103 = vmatprep.subr.mxu0 0.0
    %104 = vmatpush2.xpose.msra.mxu0 0.0
    %105 = vmatprep.subr.mxu0 0.0
    %106 = vmatpush2.xpose.msra.mxu0 0.0
    %107 = vmatprep.subr.mxu0 0.0
    %108 = vmatpush2.xpose.msra.mxu0 0.0
    %109 = vmatprep.subr.mxu0 0.0
    %110 = vmatpush2.xpose.msra.mxu0 0.0
    %111 = vmatprep.subr.mxu0 0.0
    %112 = vmatpush2.xpose.msra.mxu0 0.0
    %113 = vmatprep.subr.mxu0 0.0
    %114 = vmatpush2.xpose.msra.mxu0 0.0
    %115 = vmatprep.subr.mxu0 0.0
    %116 = vmatpush2.xpose.msra.mxu0 0.0
    %117 = vmatprep.mubr.f32.mxu0 0.0
    %118 = vmatmul.mubr.f32.gmra.mxu0 %v48
    %v119 = vpop.f32.mrf.mxu0
    %v120 = vadd.f32 0.0, %v119
    %v121 = vpop.f32.mrf.mxu0
    %122 = vdwg.mxu0
    %v124 = vsel %vm46, %v43, 0
    %v127 = vsel %vm46, %v45, 0
    %129 = vmatprep.subr.mxu0 0.0
    %130 = vmatpush1.xpose.msra.mxu0 0.0
    %131 = vmatprep.subr.mxu0 0.0
    %132 = vmatpush1.xpose.msra.mxu0 0.0
    %133 = vmatprep.subr.mxu0 0.0
    %134 = vmatpush1.xpose.msra.mxu0 0.0
    %135 = vmatprep.subr.mxu0 0.0
    %136 = vmatpush1.xpose.msra.mxu0 0.0
    %137 = vmatprep.subr.mxu0 0.0
    %138 = vmatpush1.xpose.msra.mxu0 0.0
    %139 = vmatprep.subr.mxu0 0.0
    %140 = vmatpush1.xpose.msra.mxu0 0.0
    %141 = vmatprep.subr.mxu0 0.0
    %142 = vmatpush1.xpose.msra.mxu0 0.0
    %143 = vmatprep.subr.mxu0 0.0
    %144 = vmatpush1.xpose.msra.mxu0 0.0
    %145 = vmatprep.subr.mxu0 0.0
    %146 = vmatpush1.xpose.msra.mxu0 0.0
    %147 = vmatprep.subr.mxu0 0.0
    %148 = vmatpush1.xpose.msra.mxu0 0.0
    %149 = vmatprep.subr.mxu0 0.0
    %150 = vmatpush1.xpose.msra.mxu0 0.0
    %151 = vmatprep.subr.mxu0 0.0
    %152 = vmatpush1.xpose.msra.mxu0 0.0
    %153 = vmatprep.subr.mxu0 0.0
    %154 = vmatpush1.xpose.msra.mxu0 0.0
    %155 = vmatprep.subr.mxu0 0.0
    %156 = vmatpush1.xpose.msra.mxu0 0.0
    %157 = vmatprep.subr.mxu0 0.0
    %158 = vmatpush1.xpose.msra.mxu0 0.0
    %159 = vmatprep.subr.mxu0 0.0
    %160 = vmatpush1.xpose.msra.mxu0 %v127
    %161 = vmatprep.subr.mxu0 0.0
    %162 = vmatpush2.xpose.msra.mxu0 0.0
    %163 = vmatprep.subr.mxu0 0.0
    %164 = vmatpush2.xpose.msra.mxu0 0.0
    %165 = vmatprep.subr.mxu0 0.0
    %166 = vmatpush2.xpose.msra.mxu0 0.0
    %167 = vmatprep.subr.mxu0 0.0
    %168 = vmatpush2.xpose.msra.mxu0 0.0
    %169 = vmatprep.subr.mxu0 0.0
    %170 = vmatpush2.xpose.msra.mxu0 0.0
    %171 = vmatprep.subr.mxu0 0.0
    %172 = vmatpush2.xpose.msra.mxu0 0.0
    %173 = vmatprep.subr.mxu0 0.0
    %174 = vmatpush2.xpose.msra.mxu0 0.0
    %175 = vmatprep.subr.mxu0 0.0
    %176 = vmatpush2.xpose.msra.mxu0 0.0
    %177 = vmatprep.subr.mxu0 0.0
    %178 = vmatpush2.xpose.msra.mxu0 0.0
    %179 = vmatprep.subr.mxu0 0.0
    %180 = vmatpush2.xpose.msra.mxu0 0.0
    %181 = vmatprep.subr.mxu0 0.0
    %182 = vmatpush2.xpose.msra.mxu0 0.0
    %183 = vmatprep.subr.mxu0 0.0
    %184 = vmatpush2.xpose.msra.mxu0 0.0
    %185 = vmatprep.subr.mxu0 0.0
    %186 = vmatpush2.xpose.msra.mxu0 0.0
    %187 = vmatprep.subr.mxu0 0.0
    %188 = vmatpush2.xpose.msra.mxu0 0.0
    %189 = vmatprep.subr.mxu0 0.0
    %190 = vmatpush2.xpose.msra.mxu0 0.0
    %191 = vmatprep.subr.mxu0 0.0
    %192 = vmatpush2.xpose.msra.mxu0 0.0
    %193 = vmatprep.mubr.f32.mxu0 0.0
    %194 = vmatmul.mubr.f32.gmra.mxu0 %v124
    %v195 = vpop.f32.mrf.mxu0
    %v196 = vadd.f32 0.0, %v195
    %v197 = vpop.f32.mrf.mxu0
    %198 = vdwg.mxu0
    %vm199 = vcmask 64512
    %v200 = vsel %vm199, %v120, -inf
    %201 = vmax.xlane.f32.xlu0 %v200
    %v202 = vpop.xlane.xlu0 %201
    %v203 = vsel %vm199, %v196, -inf
    %204 = vmax.xlane.f32.xlu0 %v203
    %v205 = vpop.xlane.xlu0 %204
    %v206 = vsub.f32 %v120, %v202
    %v207 = vsub.f32 %v196, %v205
    %v208 = vmul.f32 %v206, 1.442695
    %v209 = vpow.pop %v208
    %v210 = vmul.f32 %v207, 1.442695
    %v211 = vpow.pop %v210
    %v212 = vsel %vm199, %v209, 0.0
    %213 = vadd.xlane.f32.xlu0 %v212
    %v214 = vpop.xlane.xlu0 %213
    %v215 = vsel %vm199, %v211, 0.0
    %216 = vadd.xlane.f32.xlu0 %v215
    %v217 = vpop.xlane.xlu0 %216
    %v218 = vrcp.pop %v214
    %v219 = vmul.f32 %v209, %v218
    %v220 = vrcp.pop %v217
    %v221 = vmul.f32 %v211, %v220
    %v222 = vcombine.high %v219, 0.0
    %v224 = vunpack.c.l.s4 1983009808
    %v225 = vunpack.c.0.s8 %v224
    %v226 = vlaneseq
    %v227 = vshrl.u32 %v226, 7
    %v228 = vsub.s32 %v225, %v227
    %v229 = vrot.slane %v219, %v228
    %v231 = vunpack.c.l.s4 1983009808
    %v232 = vunpack.c.0.s8 %v231
    %v233 = vlaneseq
    %v234 = vshrl.u32 %v233, 7
    %v235 = vsub.s32 %v232, %v234
    %v236 = vrot.slane %v222, %v235
    %v237 = vcombine.high %v221, 0.0
    %v239 = vunpack.c.l.s4 1983009808
    %v240 = vunpack.c.0.s8 %v239
    %v241 = vlaneseq
    %v242 = vshrl.u32 %v241, 7
    %v243 = vsub.s32 %v240, %v242
    %v244 = vrot.slane %v221, %v243
    %v246 = vunpack.c.l.s4 1983009808
    %v247 = vunpack.c.0.s8 %v246
    %v248 = vlaneseq
    %v249 = vshrl.u32 %v248, 7
    %v250 = vsub.s32 %v247, %v249
    %v251 = vrot.slane %v237, %v250
    %v252 = vcombine.low %v229, %v244
    %v253 = vcombine.high %v229, %v244
    %v255 = vunpack.c.l.s4 1934713408
    %v256 = vunpack.c.0.s8 %v255
    %v257 = vlaneseq
    %v258 = vshrl.u32 %v257, 7
    %v259 = vsub.s32 %v256, %v258
    %v260 = vrot.slane %v252, %v259
    %v262 = vunpack.c.l.s4 1934713408
    %v263 = vunpack.c.0.s8 %v262
    %v264 = vlaneseq
    %v265 = vshrl.u32 %v264, 7
    %v266 = vsub.s32 %v263, %v265
    %v267 = vrot.slane %v253, %v266
    %v268 = vcombine.low %v236, %v251
    %v269 = vcombine.high %v236, %v251
    %v271 = vunpack.c.l.s4 1934713408
    %v272 = vunpack.c.0.s8 %v271
    %v273 = vlaneseq
    %v274 = vshrl.u32 %v273, 7
    %v275 = vsub.s32 %v272, %v274
    %v276 = vrot.slane %v268, %v275
    %v278 = vunpack.c.l.s4 1934713408
    %v279 = vunpack.c.0.s8 %v278
    %v280 = vlaneseq
    %v281 = vshrl.u32 %v280, 7
    %v282 = vsub.s32 %v279, %v281
    %v283 = vrot.slane %v269, %v282
    %v284 = vcombine.high %v260, 0.0
    %v285 = vcombine.high %v267, 0.0
    %v286 = vcombine.high %v276, 0.0
    %v287 = vcombine.high %v283, 0.0
    %289 = vrot.lane.b32.xlu0 %v284, 8
    %v290 = vpop.permute.xlu0 %289
    %293 = vrot.lane.b32.xlu0 %v267, 16
    %v294 = vpop.permute.xlu0 %293
    %297 = vrot.lane.b32.xlu0 %v285, 24
    %v298 = vpop.permute.xlu0 %297
    %301 = vrot.lane.b32.xlu0 %v276, 32
    %v302 = vpop.permute.xlu0 %301
    %305 = vrot.lane.b32.xlu0 %v286, 40
    %v306 = vpop.permute.xlu0 %305
    %309 = vrot.lane.b32.xlu0 %v283, 48
    %v310 = vpop.permute.xlu0 %309
    %313 = vrot.lane.b32.xlu0 %v287, 56
    %v314 = vpop.permute.xlu0 %313
    %v316 = vsel %vm199, %v260, %v290
    %vm317 = vcmask 130048
    %v318 = vsel %vm317, %v316, %v294
    %vm319 = vcmask 195584
    %v320 = vsel %vm319, %v318, %v298
    %v321 = vsel %vm46, %v320, %v302
    %vm322 = vcmask 326656
    %v323 = vsel %vm322, %v321, %v306
    %vm324 = vcmask 392192
    %v325 = vsel %vm324, %v323, %v310
    %vm326 = vcmask 457728
    %v327 = vsel %vm326, %v325, %v314
    %vm328 = vcmask 517120
    %329 = vst.msk [vmem:[#allocation7] sm:$0x3] %vm328, %v327
    // Predicated region
    $region18: #{tpu_custom_call.1} parent=1 // pred_check
      _
    $region19: #{tpu_custom_call.1} parent=1 // pred_check_branch
      %331 = sbr.rel (0) target = $region21
    $region20: #{tpu_custom_call.1} parent=1 // pred_region
      %s333 = ssub.s32 32, 32
      %334 = vsyncadd [#allocation4], %s333
      %s336 = sshll.u32 [#allocation7], 4
      %s337 = int_to_ptr.vmem [resolvable:$true] %s336
      %339 = dma.vmem_to_hbm [thread:$0]  %s337, 32, %s2, [#allocation4]
    $region21: #{tpu_custom_call.1} parent=1 // pred_fallthru
      _
    // Predicated region
    $region22: #{tpu_custom_call.1} parent=1 // pred_check
      _
    $region23: #{tpu_custom_call.1} parent=1 // pred_check_branch
      %341 = sbr.rel (0) target = $region25
    $region24: #{tpu_custom_call.1} parent=1 // pred_region
      %342 = dma.done [#allocation4], 32
    $region25: #{tpu_custom_call.1} parent=1 // pred_fallthru
      _
    %343 = vsyncpa [#allocation3], 1
    %344 = vsyncpa [#allocation6], 1
    %345 = vsyncpa [#allocation4], 1

</llo_original>
